<compile_context>
chip_gen: v5e
topology: v5e:2x2
jax: 0.10.0
libtpu: 0.0.40
codegen_flags: <defaults>
</compile_context>

<pallas_src>
import re
from typing import Optional, Tuple

import numpy as np
import jax
import jax.numpy as jnp
from jax.experimental import pallas as pl
from jax.experimental.pallas import tpu as pltpu


# --------------------------------------------------------------------------
# Kernels
# --------------------------------------------------------------------------
def _identity_copy_kernel(x_ref, o_ref):
    # Straight VMEM tile copy; double-buffered / pipelined across the grid.
    o_ref[...] = x_ref[...]


def _dma_copy_kernel(x_hbm_ref, o_hbm_ref, sem):
    # Whole-array HBM -> HBM DMA: exactly read-N + write-N bytes of traffic,
    # works for any shape (incl. non-multiple-of-128 element counts) with no
    # wrapper-side pad / slice / concat.
    cp = pltpu.make_async_copy(x_hbm_ref, o_hbm_ref, sem)
    cp.start()
    cp.wait()


# --------------------------------------------------------------------------
# Generation-aware tiling budget
# --------------------------------------------------------------------------
def _tpu_generation() -> int:
    """Best-effort TPU generation (5 for v5e/v5p, 6 for v6e, 7 for v7x, ...)."""
    # TODO(synk): pltpu.get_tpu_info() could provide this directly, but its
    # field names vary across jax versions; device_kind parsing is robust.
    try:
        kind = jax.devices()[0].device_kind  # e.g. "TPU v5 lite", "TPU v6e"
        m = re.search(r"(\d+)", kind)
        if m:
            return int(m.group(1))
    except Exception:
        pass
    return 0  # unknown -> conservative settings


def _block_budget() -> Tuple[int, int]:
    """Returns (target block bytes, vmem_limit_bytes) for the copy kernel."""
    gen = _tpu_generation()
    if gen >= 6:
        # v6e / v7x: 4 MiB blocks (~85-90% of v7x's 3.2 TB/s roofline).
        # 4 MiB x 2 buffers x (in + out) = 16 MiB, under the explicit limit.
        return 4 << 20, 32 << 20
    # v5e (and older / unknown): 2 MiB already reaches ~90% of roofline and
    # stays well inside the 16 MiB scoped-VMEM default (footprint 8 MiB).
    return 2 << 20, 24 << 20


def _cdiv(a: int, b: int) -> int:
    return -(-a // b)


def _round_up(a: int, b: int) -> int:
    return _cdiv(a, b) * b


# --------------------------------------------------------------------------
# Materialized copy dispatcher
# --------------------------------------------------------------------------
_SMALL_BYTES = 256 << 10  # below this, pallas launch overhead dominates


def _pallas_tiled_copy(x: jax.Array, total: int) -> jax.Array:
    """Lane-dense (rows, 128) pipelined copy; requires total % 128 == 0."""
    lanes = 128
    itemsize = jnp.dtype(x.dtype).itemsize
    rows = total // lanes
    # Native sublane packing: 8 rows for 32-bit, 16 for 16-bit, 32 for 8-bit.
    sublane_pack = max(8, 32 // itemsize)

    block_bytes, vmem_limit = _block_budget()
    max_tile_rows = max(sublane_pack, block_bytes // (lanes * itemsize))
    max_tile_rows = (max_tile_rows // sublane_pack) * sublane_pack

    tile_rows = min(max_tile_rows, _round_up(rows, sublane_pack))
    # Megacore guard (matters on v7x, 2 TCs): keep >= 2 grid steps so the
    # "parallel" axis actually gives both cores work.
    if _cdiv(rows, tile_rows) < 2 and rows > sublane_pack:
        tile_rows = max(sublane_pack, _round_up(_cdiv(rows, 2), sublane_pack))

    grid = (_cdiv(rows, tile_rows),)  # last block may be partial: Pallas
    # bounds-masks only that final tile; no wrapper-side padding needed.

    x2d = x.reshape(rows, lanes)  # metadata-only for a contiguous array
    out2d = pl.pallas_call(
        _identity_copy_kernel,
        out_shape=jax.ShapeDtypeStruct((rows, lanes), x.dtype),
        grid=grid,
        in_specs=[pl.BlockSpec((tile_rows, lanes), lambda i: (i, 0))],
        out_specs=pl.BlockSpec((tile_rows, lanes), lambda i: (i, 0)),
        compiler_params=pltpu.CompilerParams(
            dimension_semantics=("parallel",),
            vmem_limit_bytes=vmem_limit),
        cost_estimate=pl.CostEstimate(
            flops=0, transcendentals=0,
            bytes_accessed=2 * total * itemsize),
    )(x2d)
    return out2d.reshape(x.shape)


def _pallas_dma_copy(x: jax.Array, total: int) -> jax.Array:
    """Whole-array HBM->HBM DMA copy (any shape, no reshape/pad/slice)."""
    itemsize = jnp.dtype(x.dtype).itemsize
    return pl.pallas_call(
        _dma_copy_kernel,
        out_shape=jax.ShapeDtypeStruct(x.shape, x.dtype),
        in_specs=[pl.BlockSpec(memory_space=pl.ANY)],
        out_specs=pl.BlockSpec(memory_space=pl.ANY),
        scratch_shapes=[pltpu.SemaphoreType.DMA],
        cost_estimate=pl.CostEstimate(
            flops=0, transcendentals=0,
            bytes_accessed=2 * total * itemsize),
    )(x)


def _materialized_copy(x: jax.Array) -> jax.Array:
    orig_shape = x.shape
    total = int(np.prod(orig_shape)) if len(orig_shape) else 1
    if total == 0:
        return x

    itemsize = jnp.dtype(x.dtype).itemsize
    if total * itemsize < _SMALL_BYTES:
        # Small-input fast path: a 1-2 step grid gets no pipelining overlap;
        # the fixed pallas launch cost would dwarf the copy itself.
        return jnp.copy(x)

    if total % 128 == 0:
        # Common case for big tensors: lane-dense tiled, pipelined copy.
        return _pallas_tiled_copy(x, total)

    # Ragged element count: a single HBM->HBM DMA keeps traffic at 2N bytes
    # (the previous pad -> copy -> slice path paid ~6N).
    return _pallas_dma_copy(x, total)


# --------------------------------------------------------------------------
# Module
# --------------------------------------------------------------------------
class Ensure:
    """JAX/Pallas port of pytorch_pfn_extras.nn.Ensure.

    Checks the (static) shape / dtype of the input and returns the input.
    By default this is a zero-copy pass-through (matching the PyTorch module,
    which simply returns `input`).  Set `materialize=True` to force a
    materialized copy through the Pallas TPU copy kernels.
    """

    def __init__(
        self,
        *,
        shape: Optional[Tuple[Optional[int], ...]] = None,
        dtype=None,
        broadcastable: bool = False,
        can_cast: bool = False,
        materialize: bool = False,
    ):
        if shape is None and dtype is None:
            raise ValueError("shape, dtype or both arguments must be specified")
        self._dtype = jnp.dtype(dtype) if dtype is not None else None
        self._broadcastable = broadcastable
        self._can_cast = can_cast
        self._materialize = materialize
        self._shape: Optional[Tuple[int, ...]] = None
        if shape is not None:
            non_none_tuple = tuple(x if x is not None else 1 for x in shape)
            if None in shape:
                self._broadcastable = True
            self._shape = non_none_tuple

    @staticmethod
    def _broadcast(shape_1: Tuple[int, ...], shape_2: Tuple[int, ...]) -> bool:
        l_1, l_2 = len(shape_1), len(shape_2)
        if l_1 != l_2:
            if l_1 < l_2:
                shape_1 = (1,) * (l_2 - l_1) + tuple(shape_1)
            else:
                shape_2 = (1,) * (l_1 - l_2) + tuple(shape_2)
        for a, b in zip(shape_1, shape_2):
            if a != b and a != 1 and b != 1:
                return False
        return True

    def __call__(self, x: jax.Array) -> jax.Array:
        t_shape = tuple(x.shape)
        if self._shape is not None and list(t_shape) != list(self._shape):
            if self._broadcastable:
                if not self._broadcast(t_shape, self._shape):
                    raise ValueError(
                        f"Shapes {self._shape} and {t_shape} are non broadcastable"
                    )
            else:
                raise ValueError(
                    f"Expected {self._shape}, input shape is {t_shape}"
                )
        if self._dtype is not None and x.dtype != self._dtype:
            if self._can_cast:
                # TODO(synk): torch.can_cast promotion rules approximated with
                # numpy "same_kind" casting; no exact JAX equivalent (fragile
                # for ml_dtypes types such as bfloat16 / fp8).
                if not np.can_cast(x.dtype, self._dtype, casting="same_kind"):
                    raise ValueError(
                        f"Input dtype {x.dtype} can't be casted to {self._dtype}"
                    )
            else:
                raise ValueError(
                    f"Expected {self._dtype}, input dtype is {x.dtype}"
                )
        # Highest-value optimization: the check is pure metadata, so the
        # default data path is a zero-copy pass-through.
        if not self._materialize:
            return x
        return _materialized_copy(x)


if __name__ == "__main__":
    key = jax.random.PRNGKey(0)
    k1, k2, k3 = jax.random.split(key, 3)

    # 1) Module-typical NCHW input, materialized: small (< 256 KiB) -> fast
    #    path (XLA-level copy, no pallas launch).
    x = jax.random.normal(k1, (2, 4, 16, 16), dtype=jnp.float32)
    module = Ensure(shape=(2, 4, 16, 16), dtype=jnp.float32, materialize=True)
    y = jax.block_until_ready(module(x))
    assert y.shape == x.shape and y.dtype == x.dtype
    np.testing.assert_array_equal(np.asarray(y), np.asarray(x))

    # 2) Default path: metadata check only, zero-copy pass-through.
    module_b = Ensure(shape=(None, 4, None, 16))
    y2 = module_b(x)
    assert y2 is x  # no kernel launch, no copy
    np.testing.assert_array_equal(np.asarray(y2), np.asarray(x))

    # 3) 128-aligned element count, above the fast-path threshold:
    #    lane-dense (rows, 128) tiled Pallas copy, grid split into >= 2 steps.
    x3 = jax.random.normal(k2, (2, 4, 128, 128), dtype=jnp.float32)
    module_c = Ensure(shape=(2, 4, None, None), dtype=jnp.float32,
                      materialize=True)
    y3 = jax.block_until_ready(module_c(x3))
    np.testing.assert_array_equal(np.asarray(y3), np.asarray(x3))

    # 4) Non-multiple-of-128 element count, above the fast-path threshold:
    #    whole-array HBM->HBM DMA copy (no pad / slice round-trips).
    x4 = jax.random.normal(k3, (3, 5, 7001), dtype=jnp.float32)
    module_d = Ensure(dtype=jnp.float32, materialize=True)
    y4 = jax.block_until_ready(module_d(x4))
    np.testing.assert_array_equal(np.asarray(y4), np.asarray(x4))

    print("KERNEL_OK")
</pallas_src>

<mosaic_0001>
module attributes {stable_mosaic.version = 11 : i64} {
  func.func @_identity_copy_kernel(%arg0: i32, %arg1: memref<512x128xf32, #tpu.memory_space<vmem>>, %arg2: memref<512x128xf32, #tpu.memory_space<vmem>>) attributes {dimension_semantics = [#tpu.dimension_semantics<parallel>], iteration_bounds = array<i64: 2>, scalar_prefetch = 0 : i64, scratch_operands = 0 : i64, tpu.core_type = #tpu.core_type<tc>, window_params = [{transform_indices = @transform_0, window_bounds = array<i64: 512, 128>}, {transform_indices = @transform_1, window_bounds = array<i64: 512, 128>}]} {
    %c0 = arith.constant 0 : index
    %c0_0 = arith.constant 0 : index
    %0 = vector.load %arg1[%c0, %c0_0] : memref<512x128xf32, #tpu.memory_space<vmem>>, vector<512x128xf32>
    %c0_1 = arith.constant 0 : index
    %c0_2 = arith.constant 0 : index
    %1 = vector.load %arg2[%c0_1, %c0_2] : memref<512x128xf32, #tpu.memory_space<vmem>>, vector<512x128xf32>
    tpu.vector_store %arg2[%c0_1, %c0_2], %0 {strides = array<i32>} : memref<512x128xf32, #tpu.memory_space<vmem>>, vector<512x128xf32>,
    return
  }
  func.func @transform_0(%arg0: i32) -> (i32, i32) {
    %c0_i32 = arith.constant 0 : i32
    %c0_i32_0 = arith.constant 0 : i32
    return %arg0, %c0_i32 : i32, i32
  }
  func.func @transform_1(%arg0: i32) -> (i32, i32) {
    %c0_i32 = arith.constant 0 : i32
    %c0_i32_0 = arith.constant 0 : i32
    return %arg0, %c0_i32 : i32, i32
  }
}

</mosaic_0001>

<llo_original>
// kernel: tpu_custom_call.1
$region0: #{tpu_custom_call.1}
  #allocation0 [shape = 'u32[]', space=smem, size = 0x4, offset = 0x4, fixed_abs, tag = 'smem constant byte address 0x4 - core index']
  #allocation1 [shape = 'u32[72,128]{1,0:T(1,128)}', space=vmem, size = 0x9000, scoped, tag = 'internal scratch']
  %s0 = inlined_call_operand.hbm [shape: f32[1024,128], index: 0, kind: input, shape index: {}]
  %s1 = inlined_call_operand.hbm [shape: f32[1024,128], index: 1, kind: output, shape index: {}]
  %s2 = sld [smem:[#allocation0]]
  $region41: #{tpu_custom_call.1} parent=0
    _
  %s4 = ssub.s32 1, %s2
  %s5 = scalar_select 0, %s4, %s2
  $region1: #{tpu_custom_call.1} parent=0
    #allocation2 [shape = 'u8[524288]{0}', space=vmem, size = 0x80000, scoped, tag = 'input window, operand 0']
    #allocation3 [shape = 's32[2]{0}', space=sflag, size = 0x8, scoped, tag = 'scoped memory for tpu_custom_call.1']
    #allocation4 [shape = 's32[2]{0}', space=sflag, size = 0x8, scoped, tag = 'scoped memory for tpu_custom_call.1']
    #allocation5 [shape = 'u8[524288]{0}', space=vmem, size = 0x80000, scoped, tag = 'output window, operand 0']
    %6 = vsyncpa [#allocation3], 0
    %s7 = scalar_lea.sflag [#allocation3], 1
    %8 = vsyncpa %s7, 0
    %9 = vsyncpa [#allocation4], 0
    %s10 = scalar_lea.sflag [#allocation4], 1
    %11 = vsyncpa %s10, 0
    loop: start=0, step=1, limit=4
    $region2: #{tpu_custom_call.1} parent=1 // loop_pre_header
      _
    $region3: #{tpu_custom_call.1} parent=1 // loop_header
      %s13 = sphi 0, %s17
      %p14 = scmp.ge.s32.totalorder %s13, 4
      %s23 = sphi 0, %s25
      %s26 = sphi 0, %s23
      %s27 = sphi 0, %s26
      %s43 = sphi 0, %s27
      %s49 = sphi 0, %s51
      %s52 = sphi 0, %s49
      %s53 = sphi 0, %s52
      %s69 = sphi 0, %s53
    $region4: #{tpu_custom_call.1} parent=1 // loop_header_branch
      %16 = sbr.rel (%p14) target = $region8
    $region5: #{tpu_custom_call.1} parent=1 // loop_body
      %s18 = ssub.s32 %s13, 1
      %s19 = ssub.s32 %s13, 2
      %s20 = sadd.s32 %s13, 1
      %s21 = ssub.s32 %s13, %s20
      %p22 = scmp.eq.s32.totalorder %s21, 0
      %s24 = sadd.s32 %s23, 1
      %s25 = scalar_select %p22, %s23, %s24
      %p28 = pneg %p22
      %p29 = scmp.eq.s32.totalorder %s13, 1
      %p30 = por %p28, %p29
      %p31 = scmp.ne.s32.totalorder %s23, %s26
      %p32 = scmp.eq.s32.totalorder %s13, 0
      %p33 = por %p31, %p32
      %p34 = scmp.ne.s32.totalorder %s23, %s26
      %p35 = scmp.eq.s32.totalorder %s18, 1
      %p36 = por %p34, %p35
      %p37 = scmp.ne.s32.totalorder %s26, %s27
      %p38 = scmp.eq.s32.totalorder %s18, 0
      %p39 = por %p37, %p38
      %p40 = scmp.ne.s32.totalorder %s26, %s27
      %p41 = scmp.eq.s32.totalorder %s19, 1
      %p42 = por %p40, %p41
      %p44 = scmp.ne.s32.totalorder %s27, %s43
      %p45 = scmp.eq.s32.totalorder %s19, 0
      %p46 = por %p44, %p45
      %s47 = ssub.s32 %s13, %s20
      %p48 = scmp.eq.s32.totalorder %s47, 0
      %s50 = sadd.s32 %s49, 1
      %s51 = scalar_select %p48, %s49, %s50
      %p54 = pneg %p48
      %p55 = scmp.eq.s32.totalorder %s13, 1
      %p56 = por %p54, %p55
      %p57 = scmp.ne.s32.totalorder %s49, %s52
      %p58 = scmp.eq.s32.totalorder %s13, 0
      %p59 = por %p57, %p58
      %p60 = scmp.ne.s32.totalorder %s49, %s52
      %p61 = scmp.eq.s32.totalorder %s18, 1
      %p62 = por %p60, %p61
      %p63 = scmp.ne.s32.totalorder %s52, %s53
      %p64 = scmp.eq.s32.totalorder %s18, 0
      %p65 = por %p63, %p64
      %p66 = scmp.ne.s32.totalorder %s52, %s53
      %p67 = scmp.eq.s32.totalorder %s19, 1
      %p68 = por %p66, %p67
      %p70 = scmp.ne.s32.totalorder %s53, %s69
      %p71 = scmp.eq.s32.totalorder %s19, 0
      %p72 = por %p70, %p71
      %p73 = scmp.le.s32.totalorder 1, %s13
      %p74 = scmp.lt.s32.totalorder %s13, 3
      %p75 = pnand %p73, %p74
      %p76 = pneg %p75
      // Predicated region
      $region9: #{tpu_custom_call.1} parent=5 // pred_check
        _
      $region10: #{tpu_custom_call.1} parent=5 // pred_check_branch
        %78 = sbr.rel (%p75) target = $region12
      $region11: #{tpu_custom_call.1} parent=5 // pred_region
        %s79 = ssub.s32 %s13, 1
      $region12: #{tpu_custom_call.1} parent=5 // pred_fallthru
        _
      %p80 = scmp.lt.s32.totalorder %s13, 2
      // Predicated region
      $region13: #{tpu_custom_call.1} parent=5 // pred_check
        %p81 = pneg %p80
      $region14: #{tpu_custom_call.1} parent=5 // pred_check_branch
        %83 = sbr.rel (%p81) target = $region16
      $region15: #{tpu_custom_call.1} parent=5 // pred_region
        // Predicated region
        $region17: #{tpu_custom_call.1} parent=15 // pred_check
          %p84 = pneg %p33
        $region18: #{tpu_custom_call.1} parent=15 // pred_check_branch
          %86 = sbr.rel (%p84) target = $region20
        $region19: #{tpu_custom_call.1} parent=15 // pred_region
          %s87 = sand.u32 %s23, 1
          %s88 = scalar_lea.sflag [#allocation3], %s87
          %s89 = sand.u32 %s23, 1
          %s90 = smul.addr %s89, 512
          %s91 = scalar_lea.vmem [#allocation2], %s90
          %s92 = smul.u32 64, %s13
          %94 = vsyncadd %s88, 0
          %s95 = smul.addr %s92, 8
          %s96 = scalar_lea.hbm %s0, %s95
          %s97 = sshll.u32 %s96, 4
          %s98 = int_to_ptr.hbm [resolvable:$true] %s97
          %s99 = sshll.u32 %s91, 4
          %s100 = int_to_ptr.vmem [resolvable:$true] %s99
          %105 = dma.hbm_to_vmem [thread:$0]  %s98, 8192, %s100, %s88, 128, 128, 8
        $region20: #{tpu_custom_call.1} parent=15 // pred_fallthru
          _
      $region16: #{tpu_custom_call.1} parent=5 // pred_fallthru
        _
      %p106 = scmp.le.s32.totalorder 1, %s13
      %p107 = scmp.lt.s32.totalorder %s13, 3
      %p108 = pnand %p106, %p107
      %p109 = pneg %p108
      // Predicated region
      $region21: #{tpu_custom_call.1} parent=5 // pred_check
        _
      $region22: #{tpu_custom_call.1} parent=5 // pred_check_branch
        %111 = sbr.rel (%p108) target = $region24
      $region23: #{tpu_custom_call.1} parent=5 // pred_region
        %s112 = ssub.s32 %s13, 1
        %s113 = sand.u32 %s26, 1
        %s114 = scalar_lea.sflag [#allocation3], %s113
        %s115 = sand.u32 %s26, 1
        %s116 = smul.addr %s115, 512
        %s117 = scalar_lea.vmem [#allocation2], %s116
        // Predicated region
        $region25: #{tpu_custom_call.1} parent=23 // pred_check
          %p118 = pneg %p39
        $region26: #{tpu_custom_call.1} parent=23 // pred_check_branch
          %120 = sbr.rel (%p118) target = $region28
        $region27: #{tpu_custom_call.1} parent=23 // pred_region
          %122 = dma.done %s114, 8192
        $region28: #{tpu_custom_call.1} parent=23 // pred_fallthru
          _
        %s123 = sand.u32 %s26, 1
        %s124 = scalar_lea.sflag [#allocation3], %s123
        %s125 = sand.u32 %s26, 1
        %s126 = smul.addr %s125, 512
        %s127 = scalar_lea.vmem [#allocation2], %s126
        %p128 = pneg %p39
        %p129 = pneg %p36
        %p130 = pneg %p65
        %p131 = pneg %p62
        %s132 = sand.u32 %s52, 1
        %s133 = scalar_lea.sflag [#allocation4], %s132
        %s134 = sand.u32 %s52, 1
        %s135 = smul.addr %s134, 512
        %s136 = scalar_lea.vmem [#allocation5], %s135
        %s137 = smul.u32 64, %s18
        %s138 = smul.u32 64, %s18
        %v139 = vld [vmem:[%s117] sm:$0xff]
        %v140 = vld [vmem:[%s117 + $0x8] sm:$0xff]
        %v141 = vld [vmem:[%s117 + $0x10] sm:$0xff]
        %v142 = vld [vmem:[%s117 + $0x18] sm:$0xff]
        %v143 = vld [vmem:[%s117 + $0x20] sm:$0xff]
        %v144 = vld [vmem:[%s117 + $0x28] sm:$0xff]
        %v145 = vld [vmem:[%s117 + $0x30] sm:$0xff]
        %v146 = vld [vmem:[%s117 + $0x38] sm:$0xff]
        %v147 = vld [vmem:[%s117 + $0x40] sm:$0xff]
        %v148 = vld [vmem:[%s117 + $0x48] sm:$0xff]
        %v149 = vld [vmem:[%s117 + $0x50] sm:$0xff]
        %v150 = vld [vmem:[%s117 + $0x58] sm:$0xff]
        %v151 = vld [vmem:[%s117 + $0x60] sm:$0xff]
        %v152 = vld [vmem:[%s117 + $0x68] sm:$0xff]
        %v153 = vld [vmem:[%s117 + $0x70] sm:$0xff]
        %v154 = vld [vmem:[%s117 + $0x78] sm:$0xff]
        %v155 = vld [vmem:[%s117 + $0x80] sm:$0xff]
        %v156 = vld [vmem:[%s117 + $0x88] sm:$0xff]
        %v157 = vld [vmem:[%s117 + $0x90] sm:$0xff]
        %v158 = vld [vmem:[%s117 + $0x98] sm:$0xff]
        %v159 = vld [vmem:[%s117 + $0xa0] sm:$0xff]
        %v160 = vld [vmem:[%s117 + $0xa8] sm:$0xff]
        %v161 = vld [vmem:[%s117 + $0xb0] sm:$0xff]
        %v162 = vld [vmem:[%s117 + $0xb8] sm:$0xff]
        %v163 = vld [vmem:[%s117 + $0xc0] sm:$0xff]
        %v164 = vld [vmem:[%s117 + $0xc8] sm:$0xff]
        %v165 = vld [vmem:[%s117 + $0xd0] sm:$0xff]
        %v166 = vld [vmem:[%s117 + $0xd8] sm:$0xff]
        %v167 = vld [vmem:[%s117 + $0xe0] sm:$0xff]
        %v168 = vld [vmem:[%s117 + $0xe8] sm:$0xff]
        %v169 = vld [vmem:[%s117 + $0xf0] sm:$0xff]
        %v170 = vld [vmem:[%s117 + $0xf8] sm:$0xff]
        %v171 = vld [vmem:[%s117 + $0x100] sm:$0xff]
        %v172 = vld [vmem:[%s117 + $0x108] sm:$0xff]
        %v173 = vld [vmem:[%s117 + $0x110] sm:$0xff]
        %v174 = vld [vmem:[%s117 + $0x118] sm:$0xff]
        %v175 = vld [vmem:[%s117 + $0x120] sm:$0xff]
        %v176 = vld [vmem:[%s117 + $0x128] sm:$0xff]
        %v177 = vld [vmem:[%s117 + $0x130] sm:$0xff]
        %v178 = vld [vmem:[%s117 + $0x138] sm:$0xff]
        %v179 = vld [vmem:[%s117 + $0x140] sm:$0xff]
        %v180 = vld [vmem:[%s117 + $0x148] sm:$0xff]
        %v181 = vld [vmem:[%s117 + $0x150] sm:$0xff]
        %v182 = vld [vmem:[%s117 + $0x158] sm:$0xff]
        %v183 = vld [vmem:[%s117 + $0x160] sm:$0xff]
        %v184 = vld [vmem:[%s117 + $0x168] sm:$0xff]
        %v185 = vld [vmem:[%s117 + $0x170] sm:$0xff]
        %v186 = vld [vmem:[%s117 + $0x178] sm:$0xff]
        %v187 = vld [vmem:[%s117 + $0x180] sm:$0xff]
        %v188 = vld [vmem:[%s117 + $0x188] sm:$0xff]
        %v189 = vld [vmem:[%s117 + $0x190] sm:$0xff]
        %v190 = vld [vmem:[%s117 + $0x198] sm:$0xff]
        %v191 = vld [vmem:[%s117 + $0x1a0] sm:$0xff]
        %v192 = vld [vmem:[%s117 + $0x1a8] sm:$0xff]
        %v193 = vld [vmem:[%s117 + $0x1b0] sm:$0xff]
        %v194 = vld [vmem:[%s117 + $0x1b8] sm:$0xff]
        %v195 = vld [vmem:[%s117 + $0x1c0] sm:$0xff]
        %v196 = vld [vmem:[%s117 + $0x1c8] sm:$0xff]
        %v197 = vld [vmem:[%s117 + $0x1d0] sm:$0xff]
        %v198 = vld [vmem:[%s117 + $0x1d8] sm:$0xff]
        %v199 = vld [vmem:[%s117 + $0x1e0] sm:$0xff]
        %v200 = vld [vmem:[%s117 + $0x1e8] sm:$0xff]
        %v201 = vld [vmem:[%s117 + $0x1f0] sm:$0xff]
        %v202 = vld [vmem:[%s117 + $0x1f8] sm:$0xff]
        %203 = vst [vmem:[%s136] sm:$0xff] %v139
        %204 = vst [vmem:[%s136 + $0x8] sm:$0xff] %v140
        %205 = vst [vmem:[%s136 + $0x10] sm:$0xff] %v141
        %206 = vst [vmem:[%s136 + $0x18] sm:$0xff] %v142
        %207 = vst [vmem:[%s136 + $0x20] sm:$0xff] %v143
        %208 = vst [vmem:[%s136 + $0x28] sm:$0xff] %v144
        %209 = vst [vmem:[%s136 + $0x30] sm:$0xff] %v145
        %210 = vst [vmem:[%s136 + $0x38] sm:$0xff] %v146
        %211 = vst [vmem:[%s136 + $0x40] sm:$0xff] %v147
        %212 = vst [vmem:[%s136 + $0x48] sm:$0xff] %v148
        %213 = vst [vmem:[%s136 + $0x50] sm:$0xff] %v149
        %214 = vst [vmem:[%s136 + $0x58] sm:$0xff] %v150
        %215 = vst [vmem:[%s136 + $0x60] sm:$0xff] %v151
        %216 = vst [vmem:[%s136 + $0x68] sm:$0xff] %v152
        %217 = vst [vmem:[%s136 + $0x70] sm:$0xff] %v153
        %218 = vst [vmem:[%s136 + $0x78] sm:$0xff] %v154
        %219 = vst [vmem:[%s136 + $0x80] sm:$0xff] %v155
        %220 = vst [vmem:[%s136 + $0x88] sm:$0xff] %v156
        %221 = vst [vmem:[%s136 + $0x90] sm:$0xff] %v157
        %222 = vst [vmem:[%s136 + $0x98] sm:$0xff] %v158
        %223 = vst [vmem:[%s136 + $0xa0] sm:$0xff] %v159
        %224 = vst [vmem:[%s136 + $0xa8] sm:$0xff] %v160
        %225 = vst [vmem:[%s136 + $0xb0] sm:$0xff] %v161
        %226 = vst [vmem:[%s136 + $0xb8] sm:$0xff] %v162
        %227 = vst [vmem:[%s136 + $0xc0] sm:$0xff] %v163
        %228 = vst [vmem:[%s136 + $0xc8] sm:$0xff] %v164
        %229 = vst [vmem:[%s136 + $0xd0] sm:$0xff] %v165
        %230 = vst [vmem:[%s136 + $0xd8] sm:$0xff] %v166
        %231 = vst [vmem:[%s136 + $0xe0] sm:$0xff] %v167
        %232 = vst [vmem:[%s136 + $0xe8] sm:$0xff] %v168
        %233 = vst [vmem:[%s136 + $0xf0] sm:$0xff] %v169
        %234 = vst [vmem:[%s136 + $0xf8] sm:$0xff] %v170
        %235 = vst [vmem:[%s136 + $0x100] sm:$0xff] %v171
        %236 = vst [vmem:[%s136 + $0x108] sm:$0xff] %v172
        %237 = vst [vmem:[%s136 + $0x110] sm:$0xff] %v173
        %238 = vst [vmem:[%s136 + $0x118] sm:$0xff] %v174
        %239 = vst [vmem:[%s136 + $0x120] sm:$0xff] %v175
        %240 = vst [vmem:[%s136 + $0x128] sm:$0xff] %v176
        %241 = vst [vmem:[%s136 + $0x130] sm:$0xff] %v177
        %242 = vst [vmem:[%s136 + $0x138] sm:$0xff] %v178
        %243 = vst [vmem:[%s136 + $0x140] sm:$0xff] %v179
        %244 = vst [vmem:[%s136 + $0x148] sm:$0xff] %v180
        %245 = vst [vmem:[%s136 + $0x150] sm:$0xff] %v181
        %246 = vst [vmem:[%s136 + $0x158] sm:$0xff] %v182
        %247 = vst [vmem:[%s136 + $0x160] sm:$0xff] %v183
        %248 = vst [vmem:[%s136 + $0x168] sm:$0xff] %v184
        %249 = vst [vmem:[%s136 + $0x170] sm:$0xff] %v185
        %250 = vst [vmem:[%s136 + $0x178] sm:$0xff] %v186
        %251 = vst [vmem:[%s136 + $0x180] sm:$0xff] %v187
        %252 = vst [vmem:[%s136 + $0x188] sm:$0xff] %v188
        %253 = vst [vmem:[%s136 + $0x190] sm:$0xff] %v189
        %254 = vst [vmem:[%s136 + $0x198] sm:$0xff] %v190
        %255 = vst [vmem:[%s136 + $0x1a0] sm:$0xff] %v191
        %256 = vst [vmem:[%s136 + $0x1a8] sm:$0xff] %v192
        %257 = vst [vmem:[%s136 + $0x1b0] sm:$0xff] %v193
        %258 = vst [vmem:[%s136 + $0x1b8] sm:$0xff] %v194
        %259 = vst [vmem:[%s136 + $0x1c0] sm:$0xff] %v195
        %260 = vst [vmem:[%s136 + $0x1c8] sm:$0xff] %v196
        %261 = vst [vmem:[%s136 + $0x1d0] sm:$0xff] %v197
        %262 = vst [vmem:[%s136 + $0x1d8] sm:$0xff] %v198
        %263 = vst [vmem:[%s136 + $0x1e0] sm:$0xff] %v199
        %264 = vst [vmem:[%s136 + $0x1e8] sm:$0xff] %v200
        %265 = vst [vmem:[%s136 + $0x1f0] sm:$0xff] %v201
        %266 = vst [vmem:[%s136 + $0x1f8] sm:$0xff] %v202
        %s267 = sand.u32 %s52, 1
        %s268 = scalar_lea.sflag [#allocation4], %s267
        %s269 = sand.u32 %s52, 1
        %s270 = smul.addr %s269, 512
        %s271 = scalar_lea.vmem [#allocation5], %s270
        // Predicated region
        $region29: #{tpu_custom_call.1} parent=23 // pred_check
          %p272 = pneg %p62
        $region30: #{tpu_custom_call.1} parent=23 // pred_check_branch
          %274 = sbr.rel (%p272) target = $region32
        $region31: #{tpu_custom_call.1} parent=23 // pred_region
          %s275 = smul.u32 64, %s18
          %277 = vsyncadd %s268, 0
          %s278 = smul.addr %s275, 8
          %s279 = scalar_lea.hbm %s1, %s278
          %s280 = sshll.u32 %s271, 4
          %s281 = int_to_ptr.vmem [resolvable:$true] %s280
          %s282 = sshll.u32 %s279, 4
          %s283 = int_to_ptr.hbm [resolvable:$true] %s282
          %288 = dma.vmem_to_hbm [thread:$0]  %s281, 8192, %s283, %s268, 128, 128, 8
        $region32: #{tpu_custom_call.1} parent=23 // pred_fallthru
          _
      $region24: #{tpu_custom_call.1} parent=5 // pred_fallthru
        _
      %p289 = scmp.le.s32.totalorder 2, %s13
      // Predicated region
      $region33: #{tpu_custom_call.1} parent=5 // pred_check
        %p290 = pneg %p289
      $region34: #{tpu_custom_call.1} parent=5 // pred_check_branch
        %292 = sbr.rel (%p290) target = $region36
      $region35: #{tpu_custom_call.1} parent=5 // pred_region
        %s293 = ssub.s32 %s13, 2
        // Predicated region
        $region37: #{tpu_custom_call.1} parent=35 // pred_check
          %p294 = pneg %p68
        $region38: #{tpu_custom_call.1} parent=35 // pred_check_branch
          %296 = sbr.rel (%p294) target = $region40
        $region39: #{tpu_custom_call.1} parent=35 // pred_region
          %s297 = sand.u32 %s53, 1
          %s298 = scalar_lea.sflag [#allocation4], %s297
          %s299 = sand.u32 %s53, 1
          %s300 = smul.addr %s299, 512
          %s301 = scalar_lea.vmem [#allocation5], %s300
          %303 = dma.done %s298, 8192
        $region40: #{tpu_custom_call.1} parent=35 // pred_fallthru
          _
      $region36: #{tpu_custom_call.1} parent=5 // pred_fallthru
        _
    $region6: #{tpu_custom_call.1} parent=1 // loop_footer
      %s17 = sadd.s32 1, %s13
    $region7: #{tpu_custom_call.1} parent=1 // loop_footer_branch
      %12 = sbr.rel target = $region3
    $region8: #{tpu_custom_call.1} parent=1 // loop_exit
      _
    %304 = vsyncpa [#allocation3], 1
    %s305 = scalar_lea.sflag [#allocation3], 1
    %306 = vsyncpa %s305, 1
    %307 = vsyncpa [#allocation4], 1
    %s308 = scalar_lea.sflag [#allocation4], 1
    %309 = vsyncpa %s308, 1

</llo_original>
